<compile_context>
chip_gen: v7x
topology: tpu7x:2x2x1
jax: 0.10.0
libtpu: 0.0.40
codegen_flags: <defaults>
</compile_context>

<pallas_src>
import functools

import jax
import jax.numpy as jnp
import numpy as np
from jax import lax
from jax.experimental import pallas as pl
from jax.experimental.pallas import tpu as pltpu


def stylegan_block_kernel(patches_ref, style_ref, convw_ref, o_ref, *,
                          neg_slope, eps):
    """One grid step == B samples.  Feature-map math in (Cout, B*HW) layout.

    patches_ref: (1, KKCpad, B*HW) im2col patches + ones row + noise row (+ zero pad)
    style_ref:   (1, 2*Cout, B)    AdaIN [scale; shift] per sample
    convw_ref:   (Cout, KKCpad)    conv weight^T with conv_b / inj_w columns folded in
    o_ref:       (1, B, Cout, HW)
    """
    b_per_step = o_ref.shape[1]
    cout = o_ref.shape[2]
    hw = o_ref.shape[3]

    # --- Conv2d(pad=1) + bias + noise injection: ONE fat MXU matmul.
    acc = jnp.dot(convw_ref[...], patches_ref[0],
                  preferred_element_type=jnp.float32)          # (Cout, B*HW)

    # --- LeakyReLU(0.2) over the whole fat block.
    acc = jnp.where(acc > 0, acc, neg_slope * acc)

    # --- Per-sample InstanceNorm2d + AdaIN on static, 128-aligned lane slices.
    inv_hw = 1.0 / hw
    style = style_ref[0]                                       # (2*Cout, B)
    for b in range(b_per_step):                                # static unroll
        seg = acc[:, b * hw:(b + 1) * hw]                      # (Cout, HW) free view
        s = jnp.sum(seg, axis=1, keepdims=True)                # (Cout, 1)
        sq = jnp.sum(seg * seg, axis=1, keepdims=True)         # (Cout, 1)
        mean = s * inv_hw
        var = jnp.maximum(sq * inv_hw - mean * mean, 0.0)      # clamp: no NaN from cancellation
        normed = (seg - mean) * lax.rsqrt(var + eps)
        scale = style[:cout, b:b + 1]                          # (Cout, 1)
        shift = style[cout:, b:b + 1]                          # (Cout, 1)
        o_ref[0, b] = (scale * normed + shift).astype(o_ref.dtype)


def micro_stylegan_generator_block(x, w, params, noise, *, starting_size,
                                   kernel_size=3, samples_per_step=None):
    """x: (N, Cin, H_in, W_in) NCHW; w: (N, w_dim); noise: (N, 1, S, S). Returns NCHW."""
    N, Cin = x.shape[0], x.shape[1]
    S = int(starting_size)
    K = int(kernel_size)
    Cout = params["conv_b"].shape[-1]
    pad = 1
    HW = S * S
    KKC = K * K * Cin
    # contraction dim: im2col taps + ones row (bias) + noise row, padded to mult of 8
    KKC_EXT = KKC + 2
    KKCpad = ((KKC_EXT + 7) // 8) * 8

    B = samples_per_step if samples_per_step is not None else N
    assert N % B == 0, "batch must be divisible by samples_per_step"
    NB = N // B

    # TODO(synk): bilinear upsample (nn.Upsample, align_corners=False) stays as
    # plain-JAX glue (jax.image.resize) rather than being fused into the kernel.
    xu = jax.image.resize(x, (N, Cin, S, S), method="bilinear")

    # --- Wrapper-side im2col (stays NCHW; no transposes needed for the conv):
    # patches[n, (kh*K + kw)*Cin + c, h*S + w] = x_pad[n, c, h+kh, w+kw]
    xp = jnp.pad(xu, ((0, 0), (0, 0), (pad, pad), (pad, pad)))
    taps = [xp[:, :, kh:kh + S, kw:kw + S] for kh in range(K) for kw in range(K)]
    patches = jnp.stack(taps, axis=1).reshape(N, KKC, HW)

    # Fold bias + noise into the contraction: extra rows [ones; noise; zero-pad].
    ones_row = jnp.ones((N, 1, HW), jnp.float32)
    noise_row = noise.reshape(N, 1, HW).astype(jnp.float32)
    zero_pad = jnp.zeros((N, KKCpad - KKC_EXT, HW), jnp.float32)
    patches_ext = jnp.concatenate([patches, ones_row, noise_row, zero_pad], axis=1)
    # Regroup B samples into the lane dim: (NB, KKCpad, B*HW).
    patches_blk = (patches_ext.reshape(NB, B, KKCpad, HW)
                   .transpose(0, 2, 1, 3)
                   .reshape(NB, KKCpad, B * HW))

    # conv weight (K,K,Cin,Cout) -> (Cout, KKC), then append conv_b / inj_w columns
    # (paired with the ones / noise rows) and zero-pad to KKCpad.
    conv_wT = jnp.transpose(params["conv_w"].reshape(KKC, Cout))          # (Cout, KKC)
    conv_b_col = params["conv_b"].reshape(Cout, 1)
    inj_w_col = params["inj_w"].reshape(Cout, 1)
    w_pad = jnp.zeros((Cout, KKCpad - KKC_EXT), jnp.float32)
    conv_wT_ext = jnp.concatenate([conv_wT, conv_b_col, inj_w_col, w_pad], axis=1)

    # --- AdaIN style projections hoisted out of the kernel: one (N,Wdim)@(Wdim,2*Cout)
    style_w = jnp.concatenate([params["scale_w"], params["shift_w"]], axis=1)
    style_b = jnp.concatenate([params["scale_b"], params["shift_b"]], axis=1)
    styles = w @ style_w + style_b                                        # (N, 2*Cout)
    styles_blk = styles.reshape(NB, B, 2 * Cout).transpose(0, 2, 1)       # (NB, 2*Cout, B)

    kernel = functools.partial(stylegan_block_kernel, neg_slope=0.2, eps=1e-5)

    flops = 2 * N * Cout * KKCpad * HW
    bytes_accessed = 4 * (NB * KKCpad * B * HW + Cout * KKCpad
                          + NB * 2 * Cout * B + N * Cout * HW)
    cost = pl.CostEstimate(flops=flops, transcendentals=N * Cout,
                           bytes_accessed=bytes_accessed)

    out_blk = pl.pallas_call(
        kernel,
        out_shape=jax.ShapeDtypeStruct((NB, B, Cout, HW), jnp.float32),
        grid_spec=pltpu.PrefetchScalarGridSpec(
            num_scalar_prefetch=0,
            grid=(NB,),
            in_specs=[
                pl.BlockSpec((1, KKCpad, B * HW), lambda g: (g, 0, 0)),   # patches
                pl.BlockSpec((1, 2 * Cout, B), lambda g: (g, 0, 0)),      # styles
                pl.BlockSpec((Cout, KKCpad), lambda g: (0, 0)),           # conv weight^T
            ],
            out_specs=pl.BlockSpec((1, B, Cout, HW), lambda g: (g, 0, 0, 0)),
        ),
        compiler_params=pltpu.CompilerParams(dimension_semantics=("parallel",)),
        cost_estimate=cost,
    )(patches_blk, styles_blk, conv_wT_ext)

    # (NB, B, Cout, HW) is already channels-first per sample: pure reshape, no transpose.
    return out_blk.reshape(N, Cout, S, S)


def reference_forward(x, w, params, noise, *, starting_size):
    """Pure-JAX reference reproducing the PyTorch forward (same upsample glue)."""
    N, Cin = x.shape[0], x.shape[1]
    S = int(starting_size)
    xu = jax.image.resize(x, (N, Cin, S, S), method="bilinear")
    w_oihw = jnp.transpose(params["conv_w"], (3, 2, 0, 1))
    y = lax.conv_general_dilated(xu, w_oihw, (1, 1), [(1, 1), (1, 1)],
                                 dimension_numbers=("NCHW", "OIHW", "NCHW"))
    y = y + params["conv_b"][0][None, :, None, None]
    y = y + params["inj_w"][0][None, :, None, None] * noise
    y = jnp.where(y > 0, y, 0.2 * y)
    mean = y.mean(axis=(2, 3), keepdims=True)
    var = ((y - mean) ** 2).mean(axis=(2, 3), keepdims=True)
    yn = (y - mean) / jnp.sqrt(var + 1e-5)
    scale = w @ params["scale_w"] + params["scale_b"][0]
    shift = w @ params["shift_w"] + params["shift_b"][0]
    return scale[:, :, None, None] * yn + shift[:, :, None, None]


if __name__ == "__main__":
    key = jax.random.PRNGKey(0)
    N, Cin, Cout, Wdim, K = 2, 4, 8, 32, 3
    H_in = 8          # input spatial
    S = 16            # starting_size (upsample target)

    keys = jax.random.split(key, 10)
    x = jax.random.normal(keys[0], (N, Cin, H_in, H_in), jnp.float32)
    w = jax.random.normal(keys[1], (N, Wdim), jnp.float32)
    # InjectNoise draws fresh N(0,1) noise each forward; generated deterministically here.
    noise = jax.random.normal(keys[2], (N, 1, S, S), jnp.float32)

    params = {
        "conv_w":  jax.random.normal(keys[3], (K, K, Cin, Cout), jnp.float32) * 0.1,
        "conv_b":  jax.random.normal(keys[4], (1, Cout), jnp.float32) * 0.1,
        "inj_w":   jax.random.normal(keys[5], (1, Cout), jnp.float32),
        "scale_w": jax.random.normal(keys[6], (Wdim, Cout), jnp.float32) * 0.1,
        "scale_b": jax.random.normal(keys[7], (1, Cout), jnp.float32) * 0.1,
        "shift_w": jax.random.normal(keys[8], (Wdim, Cout), jnp.float32) * 0.1,
        "shift_b": jax.random.normal(keys[9], (1, Cout), jnp.float32) * 0.1,
    }

    out = micro_stylegan_generator_block(x, w, params, noise,
                                         starting_size=S, kernel_size=K,
                                         samples_per_step=N)
    out = jax.block_until_ready(out)

    ref = reference_forward(x, w, params, noise, starting_size=S)
    np.testing.assert_allclose(np.asarray(out), np.asarray(ref), rtol=1e-4, atol=1e-4)
    print("KERNEL_OK")
</pallas_src>

<mosaic_0001>
module attributes {stable_mosaic.version = 11 : i64} {
  func.func @stylegan_block_kernel(%arg0: i32, %arg1: memref<1x40x512xf32, #tpu.memory_space<vmem>>, %arg2: memref<1x16x2xf32, #tpu.memory_space<vmem>>, %arg3: memref<8x40xf32, #tpu.memory_space<vmem>>, %arg4: memref<1x2x8x256xf32, #tpu.memory_space<vmem>>) attributes {dimension_semantics = [#tpu.dimension_semantics<parallel>], iteration_bounds = array<i64: 1>, scalar_prefetch = 0 : i64, scratch_operands = 0 : i64, tpu.core_type = #tpu.core_type<tc>, window_params = [{transform_indices = @transform_0, window_bounds = array<i64: 1, 40, 512>}, {transform_indices = @transform_1, window_bounds = array<i64: 1, 16, 2>}, {pipeline_mode = #tpu.pipeline_mode<synchronous>, transform_indices = @transform_2, window_bounds = array<i64: 8, 40>}, {transform_indices = @transform_3, window_bounds = array<i64: 1, 2, 8, 256>}]} {
    %c0 = arith.constant 0 : index
    %c0_0 = arith.constant 0 : index
    %0 = vector.load %arg3[%c0, %c0_0] : memref<8x40xf32, #tpu.memory_space<vmem>>, vector<8x40xf32>
    %c0_1 = arith.constant 0 : index
    %c0_2 = arith.constant 0 : index
    %c0_3 = arith.constant 0 : index
    %1 = vector.load %arg1[%c0_1, %c0_2, %c0_3] : memref<1x40x512xf32, #tpu.memory_space<vmem>>, vector<1x40x512xf32>
    %2 = vector.shape_cast %1 : vector<1x40x512xf32> to vector<40x512xf32>
    %cst = arith.constant dense<0.000000e+00> : vector<8x512xf32>
    %3 = tpu.matmul %0, %2, %cst {dimension_numbers = #tpu.dot_dimension_numbers<[1], [0], [0], [1], [0, 0, 1, 1], [], []>} : vector<8x40xf32>, vector<40x512xf32>, vector<8x512xf32> -> vector<8x512xf32>
    %cst_4 = arith.constant 0.000000e+00 : f32
    %4 = vector.broadcast %cst_4 : f32 to vector<8x512xf32>
    %5 = arith.cmpf ogt, %3, %4 : vector<8x512xf32>
    %cst_5 = arith.constant 2.000000e-01 : f32
    %6 = vector.broadcast %cst_5 : f32 to vector<8x512xf32>
    %7 = arith.mulf %6, %3 : vector<8x512xf32>
    %8 = arith.select %5, %3, %7 : vector<8x512xi1>, vector<8x512xf32>
    %c0_6 = arith.constant 0 : index
    %c0_7 = arith.constant 0 : index
    %c0_8 = arith.constant 0 : index
    %9 = vector.load %arg2[%c0_6, %c0_7, %c0_8] : memref<1x16x2xf32, #tpu.memory_space<vmem>>, vector<1x16x2xf32>
    %10 = vector.shape_cast %9 : vector<1x16x2xf32> to vector<16x2xf32>
    %11 = vector.extract_strided_slice %8 {offsets = [0, 0], sizes = [8, 256], strides = [1, 1]} : vector<8x512xf32> to vector<8x256xf32>
    %cst_9 = arith.constant dense<0.000000e+00> : vector<8xf32>
    %12 = vector.multi_reduction <add>, %11, %cst_9 [1] : vector<8x256xf32> to vector<8xf32>
    %13 = vector.shape_cast %12 : vector<8xf32> to vector<8x1xf32>
    %14 = arith.mulf %11, %11 : vector<8x256xf32>
    %cst_10 = arith.constant dense<0.000000e+00> : vector<8xf32>
    %15 = vector.multi_reduction <add>, %14, %cst_10 [1] : vector<8x256xf32> to vector<8xf32>
    %16 = vector.shape_cast %15 : vector<8xf32> to vector<8x1xf32>
    %cst_11 = arith.constant 3.906250e-03 : f32
    %17 = vector.broadcast %cst_11 : f32 to vector<8x1xf32>
    %18 = arith.mulf %13, %17 : vector<8x1xf32>
    %cst_12 = arith.constant 3.906250e-03 : f32
    %19 = vector.broadcast %cst_12 : f32 to vector<8x1xf32>
    %20 = arith.mulf %16, %19 : vector<8x1xf32>
    %21 = arith.mulf %18, %18 : vector<8x1xf32>
    %22 = arith.subf %20, %21 : vector<8x1xf32>
    %cst_13 = arith.constant 0.000000e+00 : f32
    %23 = vector.broadcast %cst_13 : f32 to vector<8x1xf32>
    %24 = arith.maximumf %22, %23 : vector<8x1xf32>
    %25 = vector.broadcast %18 : vector<8x1xf32> to vector<8x256xf32>
    %26 = arith.subf %11, %25 : vector<8x256xf32>
    %cst_14 = arith.constant 9.99999974E-6 : f32
    %27 = vector.broadcast %cst_14 : f32 to vector<8x1xf32>
    %28 = arith.addf %24, %27 : vector<8x1xf32>
    %29 = math.rsqrt %28 : vector<8x1xf32>
    %30 = vector.broadcast %29 : vector<8x1xf32> to vector<8x256xf32>
    %31 = arith.mulf %26, %30 : vector<8x256xf32>
    %32 = vector.extract_strided_slice %10 {offsets = [0, 0], sizes = [8, 1], strides = [1, 1]} : vector<16x2xf32> to vector<8x1xf32>
    %33 = vector.extract_strided_slice %10 {offsets = [8, 0], sizes = [8, 1], strides = [1, 1]} : vector<16x2xf32> to vector<8x1xf32>
    %34 = vector.broadcast %32 : vector<8x1xf32> to vector<8x256xf32>
    %35 = arith.mulf %34, %31 : vector<8x256xf32>
    %36 = vector.broadcast %33 : vector<8x1xf32> to vector<8x256xf32>
    %37 = arith.addf %35, %36 : vector<8x256xf32>
    %c0_15 = arith.constant 0 : index
    %c0_16 = arith.constant 0 : index
    %c0_17 = arith.constant 0 : index
    %c0_18 = arith.constant 0 : index
    %38 = vector.load %arg4[%c0_15, %c0_16, %c0_17, %c0_18] : memref<1x2x8x256xf32, #tpu.memory_space<vmem>>, vector<1x1x8x256xf32>
    %39 = vector.shape_cast %38 : vector<1x1x8x256xf32> to vector<8x256xf32>
    %40 = vector.shape_cast %37 : vector<8x256xf32> to vector<1x1x8x256xf32>
    tpu.vector_store %arg4[%c0_15, %c0_16, %c0_17, %c0_18], %40 {strides = array<i32>} : memref<1x2x8x256xf32, #tpu.memory_space<vmem>>, vector<1x1x8x256xf32>,
    %41 = vector.extract_strided_slice %8 {offsets = [0, 256], sizes = [8, 256], strides = [1, 1]} : vector<8x512xf32> to vector<8x256xf32>
    %cst_19 = arith.constant dense<0.000000e+00> : vector<8xf32>
    %42 = vector.multi_reduction <add>, %41, %cst_19 [1] : vector<8x256xf32> to vector<8xf32>
    %43 = vector.shape_cast %42 : vector<8xf32> to vector<8x1xf32>
    %44 = arith.mulf %41, %41 : vector<8x256xf32>
    %cst_20 = arith.constant dense<0.000000e+00> : vector<8xf32>
    %45 = vector.multi_reduction <add>, %44, %cst_20 [1] : vector<8x256xf32> to vector<8xf32>
    %46 = vector.shape_cast %45 : vector<8xf32> to vector<8x1xf32>
    %cst_21 = arith.constant 3.906250e-03 : f32
    %47 = vector.broadcast %cst_21 : f32 to vector<8x1xf32>
    %48 = arith.mulf %43, %47 : vector<8x1xf32>
    %cst_22 = arith.constant 3.906250e-03 : f32
    %49 = vector.broadcast %cst_22 : f32 to vector<8x1xf32>
    %50 = arith.mulf %46, %49 : vector<8x1xf32>
    %51 = arith.mulf %48, %48 : vector<8x1xf32>
    %52 = arith.subf %50, %51 : vector<8x1xf32>
    %cst_23 = arith.constant 0.000000e+00 : f32
    %53 = vector.broadcast %cst_23 : f32 to vector<8x1xf32>
    %54 = arith.maximumf %52, %53 : vector<8x1xf32>
    %55 = vector.broadcast %48 : vector<8x1xf32> to vector<8x256xf32>
    %56 = arith.subf %41, %55 : vector<8x256xf32>
    %cst_24 = arith.constant 9.99999974E-6 : f32
    %57 = vector.broadcast %cst_24 : f32 to vector<8x1xf32>
    %58 = arith.addf %54, %57 : vector<8x1xf32>
    %59 = math.rsqrt %58 : vector<8x1xf32>
    %60 = vector.broadcast %59 : vector<8x1xf32> to vector<8x256xf32>
    %61 = arith.mulf %56, %60 : vector<8x256xf32>
    %62 = vector.extract_strided_slice %10 {offsets = [0, 1], sizes = [8, 1], strides = [1, 1]} : vector<16x2xf32> to vector<8x1xf32>
    %63 = vector.extract_strided_slice %10 {offsets = [8, 1], sizes = [8, 1], strides = [1, 1]} : vector<16x2xf32> to vector<8x1xf32>
    %64 = vector.broadcast %62 : vector<8x1xf32> to vector<8x256xf32>
    %65 = arith.mulf %64, %61 : vector<8x256xf32>
    %66 = vector.broadcast %63 : vector<8x1xf32> to vector<8x256xf32>
    %67 = arith.addf %65, %66 : vector<8x256xf32>
    %c0_25 = arith.constant 0 : index
    %c1 = arith.constant 1 : index
    %c0_26 = arith.constant 0 : index
    %c0_27 = arith.constant 0 : index
    %68 = vector.load %arg4[%c0_25, %c1, %c0_26, %c0_27] : memref<1x2x8x256xf32, #tpu.memory_space<vmem>>, vector<1x1x8x256xf32>
    %69 = vector.shape_cast %68 : vector<1x1x8x256xf32> to vector<8x256xf32>
    %70 = vector.shape_cast %67 : vector<8x256xf32> to vector<1x1x8x256xf32>
    tpu.vector_store %arg4[%c0_25, %c1, %c0_26, %c0_27], %70 {strides = array<i32>} : memref<1x2x8x256xf32, #tpu.memory_space<vmem>>, vector<1x1x8x256xf32>,
    return
  }
  func.func @transform_0(%arg0: i32) -> (i32, i32, i32) {
    %c0_i32 = arith.constant 0 : i32
    %c0_i32_0 = arith.constant 0 : i32
    %c0_i32_1 = arith.constant 0 : i32
    return %arg0, %c0_i32, %c0_i32_0 : i32, i32, i32
  }
  func.func @transform_1(%arg0: i32) -> (i32, i32, i32) {
    %c0_i32 = arith.constant 0 : i32
    %c0_i32_0 = arith.constant 0 : i32
    %c0_i32_1 = arith.constant 0 : i32
    return %arg0, %c0_i32, %c0_i32_0 : i32, i32, i32
  }
  func.func @transform_2(%arg0: i32) -> (i32, i32) {
    %c0_i32 = arith.constant 0 : i32
    %c0_i32_0 = arith.constant 0 : i32
    %c0_i32_1 = arith.constant 0 : i32
    return %c0_i32, %c0_i32_0 : i32, i32
  }
  func.func @transform_3(%arg0: i32) -> (i32, i32, i32, i32) {
    %c0_i32 = arith.constant 0 : i32
    %c0_i32_0 = arith.constant 0 : i32
    %c0_i32_1 = arith.constant 0 : i32
    %c0_i32_2 = arith.constant 0 : i32
    return %arg0, %c0_i32, %c0_i32_0, %c0_i32_1 : i32, i32, i32, i32
  }
}

</mosaic_0001>

<llo_original>
// kernel: tpu_custom_call.1
$region0: #{tpu_custom_call.1}
  #allocation0 [shape = 'u32[]', space=smem, size = 0x4, offset = 0x4, fixed_abs, tag = 'smem constant byte address 0x4 - core index']
  #allocation1 [shape = 'u32[144,128]{1,0:T(1,128)}', space=vmem, size = 0x12000, scoped, tag = 'internal scratch']
  %s0 = inlined_call_operand.hbm [shape: f32[1,40,512], index: 0, kind: input, shape index: {}]
  %s1 = inlined_call_operand.vmem [shape: f32[1,16,2], index: 1, kind: input, shape index: {}]
  %s2 = inlined_call_operand.vmem [shape: f32[8,40], index: 2, kind: input, shape index: {}]
  %s3 = inlined_call_operand.hbm [shape: f32[1,2,8,256], index: 3, kind: output, shape index: {}]
  %s4 = sld [smem:[#allocation0]]
  $region26: #{tpu_custom_call.1} parent=0
    _
  %s6 = ssub.s32 1, %s4
  %s7 = scalar_select 0, %s6, %s4
  $region1: #{tpu_custom_call.1} parent=0
    #allocation2 [shape = 'u8[81920]{0}', space=vmem, size = 0x14000, scoped, tag = 'input window, operand 0, single buffered']
    #allocation3 [shape = 's32[1]{0}', space=sflag, size = 0x4, scoped, tag = 'scoped memory for tpu_custom_call.1']
    #allocation4 [shape = 's32[1]{0}', space=sflag, size = 0x4, scoped, tag = 'scoped memory for tpu_custom_call.1']
    #allocation5 [shape = 'u8[16384]{0}', space=vmem, size = 0x4000, scoped, tag = 'output window, operand 0, single buffered']
    %8 = vsyncpa [#allocation3], 0
    %9 = vsyncpa [#allocation4], 0
    // Predicated region
    $region2: #{tpu_custom_call.1} parent=1 // pred_check
      _
    $region3: #{tpu_custom_call.1} parent=1 // pred_check_branch
      %11 = sbr.rel (0) target = $region5
    $region4: #{tpu_custom_call.1} parent=1 // pred_region
      %s13 = ssub.s32 2560, 2560
      %14 = vsyncadd [#allocation3], %s13
      %s15 = sshll.u32 [#allocation2], 4
      %s16 = int_to_ptr.vmem [resolvable:$true] %s15
      %21 = dma.hbm_to_vmem [thread:$0]  %s0, 2560, %s16, [#allocation3], 512, 512, 32
    $region5: #{tpu_custom_call.1} parent=1 // pred_fallthru
      _
    // Predicated region
    $region6: #{tpu_custom_call.1} parent=1 // pred_check
      _
    $region7: #{tpu_custom_call.1} parent=1 // pred_check_branch
      %23 = sbr.rel (0) target = $region9
    $region8: #{tpu_custom_call.1} parent=1 // pred_region
      _
    $region9: #{tpu_custom_call.1} parent=1 // pred_fallthru
      _
    // Predicated region
    $region10: #{tpu_custom_call.1} parent=1 // pred_check
      _
    $region11: #{tpu_custom_call.1} parent=1 // pred_check_branch
      %25 = sbr.rel (0) target = $region13
    $region12: #{tpu_custom_call.1} parent=1 // pred_region
      _
    $region13: #{tpu_custom_call.1} parent=1 // pred_fallthru
      _
    // Predicated region
    $region14: #{tpu_custom_call.1} parent=1 // pred_check
      _
    $region15: #{tpu_custom_call.1} parent=1 // pred_check_branch
      %27 = sbr.rel (0) target = $region17
    $region16: #{tpu_custom_call.1} parent=1 // pred_region
      %28 = dma.done [#allocation3], 2560
    $region17: #{tpu_custom_call.1} parent=1 // pred_fallthru
      _
    %v29 = vld [vmem:[%s2] sm:$0xff]
    %v30 = vld [vmem:[#allocation2] sm:$0xff]
    %v31 = vld [vmem:[#allocation2 + $0x8] sm:$0xff]
    %v32 = vld [vmem:[#allocation2 + $0x10] sm:$0xff]
    %v33 = vld [vmem:[#allocation2 + $0x18] sm:$0xff]
    %v34 = vld [vmem:[#allocation2 + $0x20] sm:$0xff]
    %v35 = vld [vmem:[#allocation2 + $0x28] sm:$0xff]
    %v36 = vld [vmem:[#allocation2 + $0x30] sm:$0xff]
    %v37 = vld [vmem:[#allocation2 + $0x38] sm:$0xff]
    %v38 = vld [vmem:[#allocation2 + $0x40] sm:$0xff]
    %v39 = vld [vmem:[#allocation2 + $0x48] sm:$0xff]
    %v40 = vld [vmem:[#allocation2 + $0x50] sm:$0xff]
    %v41 = vld [vmem:[#allocation2 + $0x58] sm:$0xff]
    %v42 = vld [vmem:[#allocation2 + $0x60] sm:$0xff]
    %v43 = vld [vmem:[#allocation2 + $0x68] sm:$0xff]
    %v44 = vld [vmem:[#allocation2 + $0x70] sm:$0xff]
    %v45 = vld [vmem:[#allocation2 + $0x78] sm:$0xff]
    %v46 = vld [vmem:[#allocation2 + $0x80] sm:$0xff]
    %v47 = vld [vmem:[#allocation2 + $0x88] sm:$0xff]
    %v48 = vld [vmem:[#allocation2 + $0x90] sm:$0xff]
    %v49 = vld [vmem:[#allocation2 + $0x98] sm:$0xff]
    %vm50 = vcmask 326656
    %v52 = vsel %vm50, %v29, 0
    %54 = vmatprep.subr.mxu0 %v31
    %55 = vmatpush1.msra.mxu0 %v30
    %56 = vmatprep.subr.mxu0 %v35
    %57 = vmatpush1.msra.mxu0 %v34
    %58 = vmatprep.subr.mxu0 %v39
    %59 = vmatpush1.msra.mxu0 %v38
    %60 = vmatprep.subr.mxu0 %v43
    %61 = vmatpush1.msra.mxu0 %v42
    %62 = vmatprep.subr.mxu0 %v47
    %63 = vmatpush1.msra.mxu0 %v46
    %64 = vmatprep.subr.mxu0 0.0
    %65 = vmatpush1.msra.mxu0 0.0
    %66 = vmatprep.subr.mxu0 0.0
    %67 = vmatpush1.msra.mxu0 0.0
    %68 = vmatprep.subr.mxu0 0.0
    %69 = vmatpush1.msra.mxu0 0.0
    %70 = vmatprep.subr.mxu0 0.0
    %71 = vmatpush1.msra.mxu0 0.0
    %72 = vmatprep.subr.mxu0 0.0
    %73 = vmatpush1.msra.mxu0 0.0
    %74 = vmatprep.subr.mxu0 0.0
    %75 = vmatpush1.msra.mxu0 0.0
    %76 = vmatprep.subr.mxu0 0.0
    %77 = vmatpush1.msra.mxu0 0.0
    %78 = vmatprep.subr.mxu0 0.0
    %79 = vmatpush1.msra.mxu0 0.0
    %80 = vmatprep.subr.mxu0 0.0
    %81 = vmatpush1.msra.mxu0 0.0
    %82 = vmatprep.subr.mxu0 0.0
    %83 = vmatpush1.msra.mxu0 0.0
    %84 = vmatprep.subr.mxu0 0.0
    %85 = vmatpush1.msra.mxu0 0.0
    %86 = vmatprep.subr.mxu0 0.0
    %87 = vmatpush1.msra.mxu0 0.0
    %88 = vmatprep.subr.mxu0 0.0
    %89 = vmatpush1.msra.mxu0 0.0
    %90 = vmatprep.subr.mxu0 0.0
    %91 = vmatpush1.msra.mxu0 0.0
    %92 = vmatprep.subr.mxu0 0.0
    %93 = vmatpush1.msra.mxu0 0.0
    %94 = vmatprep.subr.mxu0 0.0
    %95 = vmatpush1.msra.mxu0 0.0
    %96 = vmatprep.subr.mxu0 0.0
    %97 = vmatpush1.msra.mxu0 0.0
    %98 = vmatprep.subr.mxu0 0.0
    %99 = vmatpush1.msra.mxu0 0.0
    %100 = vmatprep.subr.mxu0 0.0
    %101 = vmatpush1.msra.mxu0 0.0
    %102 = vmatprep.subr.mxu0 0.0
    %103 = vmatpush1.msra.mxu0 0.0
    %104 = vmatprep.subr.mxu0 0.0
    %105 = vmatpush1.msra.mxu0 0.0
    %106 = vmatprep.subr.mxu0 0.0
    %107 = vmatpush1.msra.mxu0 0.0
    %108 = vmatprep.subr.mxu0 0.0
    %109 = vmatpush1.msra.mxu0 0.0
    %110 = vmatprep.subr.mxu0 0.0
    %111 = vmatpush1.msra.mxu0 0.0
    %112 = vmatprep.subr.mxu0 0.0
    %113 = vmatpush1.msra.mxu0 0.0
    %114 = vmatprep.subr.mxu0 0.0
    %115 = vmatpush1.msra.mxu0 0.0
    %116 = vmatprep.subr.mxu0 0.0
    %117 = vmatpush1.msra.mxu0 0.0
    %118 = vmatprep.mubr.f32.mxu0 0.0
    %119 = vmatmul.mubr.f32.gmra.mrb[0].mxu0 %v52
    %v120 = vpop.f32.mrb[0].mxu0
    %v121 = vadd.f32 0.0, %v120
    %v122 = vpop.f32.mrb[0].mxu0
    %v123 = vadd.f32 0.0, %v122
    %124 = vdwg.mxu0
    %125 = vmatprep.subr.mxu0 %v33
    %126 = vmatpush1.msra.mxu0 %v32
    %127 = vmatprep.subr.mxu0 %v37
    %128 = vmatpush1.msra.mxu0 %v36
    %129 = vmatprep.subr.mxu0 %v41
    %130 = vmatpush1.msra.mxu0 %v40
    %131 = vmatprep.subr.mxu0 %v45
    %132 = vmatpush1.msra.mxu0 %v44
    %133 = vmatprep.subr.mxu0 %v49
    %134 = vmatpush1.msra.mxu0 %v48
    %135 = vmatprep.subr.mxu0 0.0
    %136 = vmatpush1.msra.mxu0 0.0
    %137 = vmatprep.subr.mxu0 0.0
    %138 = vmatpush1.msra.mxu0 0.0
    %139 = vmatprep.subr.mxu0 0.0
    %140 = vmatpush1.msra.mxu0 0.0
    %141 = vmatprep.subr.mxu0 0.0
    %142 = vmatpush1.msra.mxu0 0.0
    %143 = vmatprep.subr.mxu0 0.0
    %144 = vmatpush1.msra.mxu0 0.0
    %145 = vmatprep.subr.mxu0 0.0
    %146 = vmatpush1.msra.mxu0 0.0
    %147 = vmatprep.subr.mxu0 0.0
    %148 = vmatpush1.msra.mxu0 0.0
    %149 = vmatprep.subr.mxu0 0.0
    %150 = vmatpush1.msra.mxu0 0.0
    %151 = vmatprep.subr.mxu0 0.0
    %152 = vmatpush1.msra.mxu0 0.0
    %153 = vmatprep.subr.mxu0 0.0
    %154 = vmatpush1.msra.mxu0 0.0
    %155 = vmatprep.subr.mxu0 0.0
    %156 = vmatpush1.msra.mxu0 0.0
    %157 = vmatprep.subr.mxu0 0.0
    %158 = vmatpush1.msra.mxu0 0.0
    %159 = vmatprep.subr.mxu0 0.0
    %160 = vmatpush1.msra.mxu0 0.0
    %161 = vmatprep.subr.mxu0 0.0
    %162 = vmatpush1.msra.mxu0 0.0
    %163 = vmatprep.subr.mxu0 0.0
    %164 = vmatpush1.msra.mxu0 0.0
    %165 = vmatprep.subr.mxu0 0.0
    %166 = vmatpush1.msra.mxu0 0.0
    %167 = vmatprep.subr.mxu0 0.0
    %168 = vmatpush1.msra.mxu0 0.0
    %169 = vmatprep.subr.mxu0 0.0
    %170 = vmatpush1.msra.mxu0 0.0
    %171 = vmatprep.subr.mxu0 0.0
    %172 = vmatpush1.msra.mxu0 0.0
    %173 = vmatprep.subr.mxu0 0.0
    %174 = vmatpush1.msra.mxu0 0.0
    %175 = vmatprep.subr.mxu0 0.0
    %176 = vmatpush1.msra.mxu0 0.0
    %177 = vmatprep.subr.mxu0 0.0
    %178 = vmatpush1.msra.mxu0 0.0
    %179 = vmatprep.subr.mxu0 0.0
    %180 = vmatpush1.msra.mxu0 0.0
    %181 = vmatprep.subr.mxu0 0.0
    %182 = vmatpush1.msra.mxu0 0.0
    %183 = vmatprep.subr.mxu0 0.0
    %184 = vmatpush1.msra.mxu0 0.0
    %185 = vmatprep.subr.mxu0 0.0
    %186 = vmatpush1.msra.mxu0 0.0
    %187 = vmatprep.subr.mxu0 0.0
    %188 = vmatpush1.msra.mxu0 0.0
    %189 = vmatprep.mubr.f32.mxu0 0.0
    %190 = vmatmul.mubr.f32.gmra.mrb[0].mxu0 %v52
    %v191 = vpop.f32.mrb[0].mxu0
    %v192 = vadd.f32 0.0, %v191
    %v193 = vpop.f32.mrb[0].mxu0
    %v194 = vadd.f32 0.0, %v193
    %195 = vdwg.mxu0
    %vm196 = vcmp.gt.f32.partialorder %v121, 0.0
    %vm197 = vcmp.gt.f32.partialorder %v123, 0.0
    %vm198 = vcmp.gt.f32.partialorder %v192, 0.0
    %vm199 = vcmp.gt.f32.partialorder %v194, 0.0
    %v200 = vmul.f32 %v121, 0.2
    %v201 = vmul.f32 %v123, 0.2
    %v202 = vmul.f32 %v192, 0.2
    %v203 = vmul.f32 %v194, 0.2
    %v204 = vsel %vm196, %v121, %v200
    %v205 = vsel %vm197, %v123, %v201
    %v206 = vsel %vm198, %v192, %v202
    %v207 = vsel %vm199, %v194, %v203
    %v208 = vld [vmem:[%s1] sm:$0xff]
    %v209 = vld [vmem:[%s1 + $0x8] sm:$0xff]
    %v210 = vadd.f32 %v204, %v205
    %211 = vadd.xlane.f32.xlu0 %v210
    %v212 = vpop.xlane.xlu0 %211
    %v213 = vmul.f32 %v204, %v204
    %v214 = vmul.f32 %v205, %v205
    %v215 = vadd.f32 %v213, %v214
    %216 = vadd.xlane.f32.xlu0 %v215
    %v217 = vpop.xlane.xlu0 %216
    %v218 = vmul.f32 %v212, 0.00390625
    %v219 = vmul.f32 %v217, 0.00390625
    %v220 = vmul.f32 %v218, %v218
    %v221 = vsub.f32 %v219, %v220
    %v222 = vmax.f32 %v221, 0.0
    %v223 = vsub.f32 %v204, %v218
    %v224 = vsub.f32 %v205, %v218
    %v225 = vadd.f32 %v222, 1e-05
    %v226 = vrsqrt.pop %v225
    %v227 = vmul.f32 %v223, %v226
    %v228 = vmul.f32 %v224, %v226
    %230 = vset.pattern.permute.xlu0 0
    %231 = vperm.xlu0 %230, %v208
    %v232 = vpop.permute.xlu0 %231
    %v234 = vmul.f32 %v232, %v227
    %v235 = vmul.f32 %v232, %v228
    %237 = vset.pattern.permute.xlu0 0
    %238 = vperm.xlu0 %237, %v209
    %v239 = vpop.permute.xlu0 %238
    %v241 = vadd.f32 %v234, %v239
    %v242 = vadd.f32 %v235, %v239
    %243 = vst [vmem:[#allocation5] sm:$0xff] %v241
    %244 = vst [vmem:[#allocation5 + $0x8] sm:$0xff] %v242
    %v245 = vadd.f32 %v206, %v207
    %246 = vadd.xlane.f32.xlu0 %v245
    %v247 = vpop.xlane.xlu0 %246
    %v248 = vmul.f32 %v206, %v206
    %v249 = vmul.f32 %v207, %v207
    %v250 = vadd.f32 %v248, %v249
    %251 = vadd.xlane.f32.xlu0 %v250
    %v252 = vpop.xlane.xlu0 %251
    %v253 = vmul.f32 %v247, 0.00390625
    %v254 = vmul.f32 %v252, 0.00390625
    %v255 = vmul.f32 %v253, %v253
    %v256 = vsub.f32 %v254, %v255
    %v257 = vmax.f32 %v256, 0.0
    %v258 = vsub.f32 %v206, %v253
    %v259 = vsub.f32 %v207, %v253
    %v260 = vadd.f32 %v257, 1e-05
    %v261 = vrsqrt.pop %v260
    %v262 = vmul.f32 %v258, %v261
    %v263 = vmul.f32 %v259, %v261
    %264 = vset.pattern.permute.xlu0 1
    %265 = vperm.xlu0 %264, %v208
    %v266 = vpop.permute.xlu0 %265
    %v268 = vmul.f32 %v266, %v262
    %v269 = vmul.f32 %v266, %v263
    %270 = vset.pattern.permute.xlu0 1
    %271 = vperm.xlu0 %270, %v209
    %v272 = vpop.permute.xlu0 %271
    %v274 = vadd.f32 %v268, %v272
    %v275 = vadd.f32 %v269, %v272
    %s276 = scalar_lea.vmem [#allocation5], 16
    %277 = vst [vmem:[%s276] sm:$0xff] %v274
    %278 = vst [vmem:[%s276 + $0x8] sm:$0xff] %v275
    // Predicated region
    $region18: #{tpu_custom_call.1} parent=1 // pred_check
      _
    $region19: #{tpu_custom_call.1} parent=1 // pred_check_branch
      %280 = sbr.rel (0) target = $region21
    $region20: #{tpu_custom_call.1} parent=1 // pred_region
      %s282 = ssub.s32 512, 512
      %283 = vsyncadd [#allocation4], %s282
      %s284 = sshll.u32 [#allocation5], 4
      %s285 = int_to_ptr.vmem [resolvable:$true] %s284
      %290 = dma.vmem_to_hbm [thread:$0]  %s285, 512, %s3, [#allocation4], 256, 256, 16
    $region21: #{tpu_custom_call.1} parent=1 // pred_fallthru
      _
    // Predicated region
    $region22: #{tpu_custom_call.1} parent=1 // pred_check
      _
    $region23: #{tpu_custom_call.1} parent=1 // pred_check_branch
      %292 = sbr.rel (0) target = $region25
    $region24: #{tpu_custom_call.1} parent=1 // pred_region
      %293 = dma.done [#allocation4], 512
    $region25: #{tpu_custom_call.1} parent=1 // pred_fallthru
      _
    %294 = vsyncpa [#allocation3], 1
    %295 = vsyncpa [#allocation4], 1

</llo_original>
